<compile_context>
chip_gen: v7x
topology: tpu7x:2x2x1
jax: 0.10.0
libtpu: 0.0.40
codegen_flags: <defaults>
</compile_context>

<pallas_src>
import jax
import jax.numpy as jnp
from jax import lax
from jax.experimental import pallas as pl
from jax.experimental.pallas import tpu as pltpu


def _siamese_fc_kernel(x1_ref, x2_ref, x3_ref, w_ref, b_ref,
                       o1_ref, o2_ref, o3_ref):
    # x*_ref: [B, F]   w_ref: [E, F] (lane-dense)   b_ref: [1, E]   o*_ref: [B, E]
    w = w_ref[...]          # resident in VMEM once, shared by all 3 branches
    b = b_ref[...]
    # Contract last dim of x with last dim of w:  [B,F] . [E,F]^T -> [B,E]
    dn = (((1,), (1,)), ((), ()))
    for x_ref, o_ref in ((x1_ref, o1_ref), (x2_ref, o2_ref), (x3_ref, o3_ref)):
        y = lax.dot_general(x_ref[...], w, dn,
                            preferred_element_type=jnp.float32)
        y = y + b
        # LeakyReLU with negative_slope = 2: min(y, 2y) == (y if y>=0 else 2y).
        # (Identity requires slope >= 1.)
        o_ref[...] = jnp.minimum(y, 2.0 * y).astype(o_ref.dtype)


def siamese_forward(input1, input2, input3, w_ef, b):
    """Replicates simpleSiameseNetwork.forward with shared fc1 weights.

    input*: [B, C, H, W] (any trailing shape; flattened to [B, F])
    w_ef:   [E, F]  -- torch-native Linear weight layout (lane-dense on TPU)
    b:      [E]
    Returns (out1, out2, out3), each [B, E].
    """
    B = input1.shape[0]
    x1 = input1.reshape(B, -1)
    x2 = input2.reshape(B, -1)
    x3 = input3.reshape(B, -1)
    F_dim = x1.shape[1]
    E = w_ef.shape[0]
    b2d = b.reshape(1, E)

    out_sds = tuple(jax.ShapeDtypeStruct((B, E), x1.dtype) for _ in range(3))

    return pl.pallas_call(
        _siamese_fc_kernel,
        out_shape=out_sds,
        grid_spec=pltpu.PrefetchScalarGridSpec(
            num_scalar_prefetch=0,
            grid=(1,),
            in_specs=[
                pl.BlockSpec((B, F_dim), lambda i: (0, 0)),
                pl.BlockSpec((B, F_dim), lambda i: (0, 0)),
                pl.BlockSpec((B, F_dim), lambda i: (0, 0)),
                pl.BlockSpec((E, F_dim), lambda i: (0, 0)),
                pl.BlockSpec((1, E), lambda i: (0, 0)),
            ],
            out_specs=[
                pl.BlockSpec((B, E), lambda i: (0, 0)),
                pl.BlockSpec((B, E), lambda i: (0, 0)),
                pl.BlockSpec((B, E), lambda i: (0, 0)),
            ],
        ),
        compiler_params=pltpu.CompilerParams(
            dimension_semantics=("arbitrary",)
        ),
    )(x1, x2, x3, w_ef, b2d)


if __name__ == "__main__":
    # Small shapes consistent with the module's forward.
    B, C, H, W = 2, 4, 16, 16
    embedding_dim = 32
    F_dim = C * H * W  # LazyLinear infers in_features at first call

    key = jax.random.PRNGKey(0)
    k1, k2, k3, kw, kb = jax.random.split(key, 5)

    input1 = jax.random.normal(k1, (B, C, H, W), dtype=jnp.float32)
    input2 = jax.random.normal(k2, (B, C, H, W), dtype=jnp.float32)
    input3 = jax.random.normal(k3, (B, C, H, W), dtype=jnp.float32)

    # Deterministic parameter init (uniform, like torch's default Linear init
    # scale 1/sqrt(F)); stored in torch-native [E, F] (lane-dense) layout.
    bound = 1.0 / jnp.sqrt(jnp.float32(F_dim))
    w_ef = jax.random.uniform(kw, (embedding_dim, F_dim), dtype=jnp.float32,
                              minval=-bound, maxval=bound)
    b = jax.random.uniform(kb, (embedding_dim,), dtype=jnp.float32,
                           minval=-bound, maxval=bound)

    out1, out2, out3 = siamese_forward(input1, input2, input3, w_ef, b)
    jax.block_until_ready((out1, out2, out3))

    # Light sanity check against a pure-JAX reference.
    def ref_once(x):
        y = x.reshape(x.shape[0], -1) @ w_ef.T + b
        return jnp.where(y >= 0, y, 2.0 * y)

    assert out1.shape == (B, embedding_dim)
    assert out2.shape == (B, embedding_dim)
    assert out3.shape == (B, embedding_dim)
    assert jnp.allclose(out1, ref_once(input1), atol=1e-5)
    assert jnp.allclose(out2, ref_once(input2), atol=1e-5)
    assert jnp.allclose(out3, ref_once(input3), atol=1e-5)

    print("KERNEL_OK")
</pallas_src>

<mosaic_0001>
module attributes {stable_mosaic.version = 11 : i64} {
  func.func @_siamese_fc_kernel(%arg0: i32, %arg1: memref<2x1024xf32, #tpu.memory_space<vmem>>, %arg2: memref<2x1024xf32, #tpu.memory_space<vmem>>, %arg3: memref<2x1024xf32, #tpu.memory_space<vmem>>, %arg4: memref<32x1024xf32, #tpu.memory_space<vmem>>, %arg5: memref<1x32xf32, #tpu.memory_space<vmem>>, %arg6: memref<2x32xf32, #tpu.memory_space<vmem>>, %arg7: memref<2x32xf32, #tpu.memory_space<vmem>>, %arg8: memref<2x32xf32, #tpu.memory_space<vmem>>) attributes {dimension_semantics = [#tpu.dimension_semantics<arbitrary>], iteration_bounds = array<i64: 1>, scalar_prefetch = 0 : i64, scratch_operands = 0 : i64, tpu.core_type = #tpu.core_type<tc>, window_params = [{pipeline_mode = #tpu.pipeline_mode<synchronous>, transform_indices = @transform_0, window_bounds = array<i64: 2, 1024>}, {pipeline_mode = #tpu.pipeline_mode<synchronous>, transform_indices = @transform_1, window_bounds = array<i64: 2, 1024>}, {pipeline_mode = #tpu.pipeline_mode<synchronous>, transform_indices = @transform_2, window_bounds = array<i64: 2, 1024>}, {pipeline_mode = #tpu.pipeline_mode<synchronous>, transform_indices = @transform_3, window_bounds = array<i64: 32, 1024>}, {pipeline_mode = #tpu.pipeline_mode<synchronous>, transform_indices = @transform_4, window_bounds = array<i64: 1, 32>}, {pipeline_mode = #tpu.pipeline_mode<synchronous>, transform_indices = @transform_5, window_bounds = array<i64: 2, 32>}, {pipeline_mode = #tpu.pipeline_mode<synchronous>, transform_indices = @transform_6, window_bounds = array<i64: 2, 32>}, {pipeline_mode = #tpu.pipeline_mode<synchronous>, transform_indices = @transform_7, window_bounds = array<i64: 2, 32>}]} {
    %c0 = arith.constant 0 : index
    %c0_0 = arith.constant 0 : index
    %0 = vector.load %arg4[%c0, %c0_0] : memref<32x1024xf32, #tpu.memory_space<vmem>>, vector<32x1024xf32>
    %c0_1 = arith.constant 0 : index
    %c0_2 = arith.constant 0 : index
    %1 = vector.load %arg5[%c0_1, %c0_2] : memref<1x32xf32, #tpu.memory_space<vmem>>, vector<1x32xf32>
    %c0_3 = arith.constant 0 : index
    %c0_4 = arith.constant 0 : index
    %2 = vector.load %arg1[%c0_3, %c0_4] : memref<2x1024xf32, #tpu.memory_space<vmem>>, vector<2x1024xf32>
    %cst = arith.constant dense<0.000000e+00> : vector<2x32xf32>
    %3 = tpu.matmul %2, %0, %cst {dimension_numbers = #tpu.dot_dimension_numbers<[1], [1], [0], [0], [0, 0, 1, 0], [], []>} : vector<2x1024xf32>, vector<32x1024xf32>, vector<2x32xf32> -> vector<2x32xf32>
    %4 = vector.broadcast %1 : vector<1x32xf32> to vector<2x32xf32>
    %5 = arith.addf %3, %4 : vector<2x32xf32>
    %cst_5 = arith.constant 2.000000e+00 : f32
    %6 = vector.broadcast %cst_5 : f32 to vector<2x32xf32>
    %7 = arith.mulf %6, %5 : vector<2x32xf32>
    %8 = arith.minimumf %5, %7 : vector<2x32xf32>
    %c0_6 = arith.constant 0 : index
    %c0_7 = arith.constant 0 : index
    %9 = vector.load %arg6[%c0_6, %c0_7] : memref<2x32xf32, #tpu.memory_space<vmem>>, vector<2x32xf32>
    tpu.vector_store %arg6[%c0_6, %c0_7], %8 {strides = array<i32>} : memref<2x32xf32, #tpu.memory_space<vmem>>, vector<2x32xf32>,
    %c0_8 = arith.constant 0 : index
    %c0_9 = arith.constant 0 : index
    %10 = vector.load %arg2[%c0_8, %c0_9] : memref<2x1024xf32, #tpu.memory_space<vmem>>, vector<2x1024xf32>
    %cst_10 = arith.constant dense<0.000000e+00> : vector<2x32xf32>
    %11 = tpu.matmul %10, %0, %cst_10 {dimension_numbers = #tpu.dot_dimension_numbers<[1], [1], [0], [0], [0, 0, 1, 0], [], []>} : vector<2x1024xf32>, vector<32x1024xf32>, vector<2x32xf32> -> vector<2x32xf32>
    %12 = vector.broadcast %1 : vector<1x32xf32> to vector<2x32xf32>
    %13 = arith.addf %11, %12 : vector<2x32xf32>
    %cst_11 = arith.constant 2.000000e+00 : f32
    %14 = vector.broadcast %cst_11 : f32 to vector<2x32xf32>
    %15 = arith.mulf %14, %13 : vector<2x32xf32>
    %16 = arith.minimumf %13, %15 : vector<2x32xf32>
    %c0_12 = arith.constant 0 : index
    %c0_13 = arith.constant 0 : index
    %17 = vector.load %arg7[%c0_12, %c0_13] : memref<2x32xf32, #tpu.memory_space<vmem>>, vector<2x32xf32>
    tpu.vector_store %arg7[%c0_12, %c0_13], %16 {strides = array<i32>} : memref<2x32xf32, #tpu.memory_space<vmem>>, vector<2x32xf32>,
    %c0_14 = arith.constant 0 : index
    %c0_15 = arith.constant 0 : index
    %18 = vector.load %arg3[%c0_14, %c0_15] : memref<2x1024xf32, #tpu.memory_space<vmem>>, vector<2x1024xf32>
    %cst_16 = arith.constant dense<0.000000e+00> : vector<2x32xf32>
    %19 = tpu.matmul %18, %0, %cst_16 {dimension_numbers = #tpu.dot_dimension_numbers<[1], [1], [0], [0], [0, 0, 1, 0], [], []>} : vector<2x1024xf32>, vector<32x1024xf32>, vector<2x32xf32> -> vector<2x32xf32>
    %20 = vector.broadcast %1 : vector<1x32xf32> to vector<2x32xf32>
    %21 = arith.addf %19, %20 : vector<2x32xf32>
    %cst_17 = arith.constant 2.000000e+00 : f32
    %22 = vector.broadcast %cst_17 : f32 to vector<2x32xf32>
    %23 = arith.mulf %22, %21 : vector<2x32xf32>
    %24 = arith.minimumf %21, %23 : vector<2x32xf32>
    %c0_18 = arith.constant 0 : index
    %c0_19 = arith.constant 0 : index
    %25 = vector.load %arg8[%c0_18, %c0_19] : memref<2x32xf32, #tpu.memory_space<vmem>>, vector<2x32xf32>
    tpu.vector_store %arg8[%c0_18, %c0_19], %24 {strides = array<i32>} : memref<2x32xf32, #tpu.memory_space<vmem>>, vector<2x32xf32>,
    return
  }
  func.func @transform_0(%arg0: i32) -> (i32, i32) {
    %c0_i32 = arith.constant 0 : i32
    %c0_i32_0 = arith.constant 0 : i32
    %c0_i32_1 = arith.constant 0 : i32
    return %c0_i32, %c0_i32_0 : i32, i32
  }
  func.func @transform_1(%arg0: i32) -> (i32, i32) {
    %c0_i32 = arith.constant 0 : i32
    %c0_i32_0 = arith.constant 0 : i32
    %c0_i32_1 = arith.constant 0 : i32
    return %c0_i32, %c0_i32_0 : i32, i32
  }
  func.func @transform_2(%arg0: i32) -> (i32, i32) {
    %c0_i32 = arith.constant 0 : i32
    %c0_i32_0 = arith.constant 0 : i32
    %c0_i32_1 = arith.constant 0 : i32
    return %c0_i32, %c0_i32_0 : i32, i32
  }
  func.func @transform_3(%arg0: i32) -> (i32, i32) {
    %c0_i32 = arith.constant 0 : i32
    %c0_i32_0 = arith.constant 0 : i32
    %c0_i32_1 = arith.constant 0 : i32
    return %c0_i32, %c0_i32_0 : i32, i32
  }
  func.func @transform_4(%arg0: i32) -> (i32, i32) {
    %c0_i32 = arith.constant 0 : i32
    %c0_i32_0 = arith.constant 0 : i32
    %c0_i32_1 = arith.constant 0 : i32
    return %c0_i32, %c0_i32_0 : i32, i32
  }
  func.func @transform_5(%arg0: i32) -> (i32, i32) {
    %c0_i32 = arith.constant 0 : i32
    %c0_i32_0 = arith.constant 0 : i32
    %c0_i32_1 = arith.constant 0 : i32
    return %c0_i32, %c0_i32_0 : i32, i32
  }
  func.func @transform_6(%arg0: i32) -> (i32, i32) {
    %c0_i32 = arith.constant 0 : i32
    %c0_i32_0 = arith.constant 0 : i32
    %c0_i32_1 = arith.constant 0 : i32
    return %c0_i32, %c0_i32_0 : i32, i32
  }
  func.func @transform_7(%arg0: i32) -> (i32, i32) {
    %c0_i32 = arith.constant 0 : i32
    %c0_i32_0 = arith.constant 0 : i32
    %c0_i32_1 = arith.constant 0 : i32
    return %c0_i32, %c0_i32_0 : i32, i32
  }
}

</mosaic_0001>

<llo_original>
// kernel: tpu_custom_call.1
$region0: #{tpu_custom_call.1}
  #allocation0 [shape = 'u32[]', space=smem, size = 0x4, offset = 0x4, fixed_abs, tag = 'smem constant byte address 0x4 - core index']
  #allocation1 [shape = 'u32[144,128]{1,0:T(1,128)}', space=vmem, size = 0x12000, scoped, tag = 'internal scratch']
  %s0 = inlined_call_operand.hbm [shape: f32[2,1024], index: 0, kind: input, shape index: {}]
  %s1 = inlined_call_operand.hbm [shape: f32[2,1024], index: 1, kind: input, shape index: {}]
  %s2 = inlined_call_operand.hbm [shape: f32[2,1024], index: 2, kind: input, shape index: {}]
  %s3 = inlined_call_operand.hbm [shape: f32[32,1024], index: 3, kind: input, shape index: {}]
  %s4 = inlined_call_operand.vmem [shape: f32[1,32], index: 4, kind: input, shape index: {}]
  %s5 = inlined_call_operand.hbm [shape: f32[2,32], index: 5, kind: output, shape index: {0}]
  %s6 = inlined_call_operand.hbm [shape: f32[2,32], index: 6, kind: output, shape index: {1}]
  %s7 = inlined_call_operand.hbm [shape: f32[2,32], index: 7, kind: output, shape index: {2}]
  %8 = xla_tuple %s5, %s6, %s7
  %s9 = sld [smem:[#allocation0]]
  $region62: #{tpu_custom_call.1} parent=0
    _
  %s11 = ssub.s32 1, %s9
  %s12 = scalar_select 0, %s11, %s9
  $region1: #{tpu_custom_call.1} parent=0
    #allocation2 [shape = 'u8[8192]{0}', space=vmem, size = 0x2000, scoped, tag = 'input window, operand 0, single buffered']
    #allocation3 [shape = 's32[1]{0}', space=sflag, size = 0x4, scoped, tag = 'scoped memory for tpu_custom_call.1']
    #allocation4 [shape = 's32[1]{0}', space=sflag, size = 0x4, scoped, tag = 'scoped memory for tpu_custom_call.1']
    #allocation5 [shape = 'u8[8192]{0}', space=vmem, size = 0x2000, scoped, tag = 'input window, operand 1, single buffered']
    #allocation6 [shape = 's32[1]{0}', space=sflag, size = 0x4, scoped, tag = 'scoped memory for tpu_custom_call.1']
    #allocation7 [shape = 'u8[8192]{0}', space=vmem, size = 0x2000, scoped, tag = 'input window, operand 2, single buffered']
    #allocation8 [shape = 'u8[131072]{0}', space=vmem, size = 0x20000, scoped, tag = 'input window, operand 3, single buffered']
    #allocation9 [shape = 's32[1]{0}', space=sflag, size = 0x4, scoped, tag = 'scoped memory for tpu_custom_call.1']
    #allocation10 [shape = 'u8[1024]{0}', space=vmem, size = 0x400, scoped, tag = 'output window, operand 0, single buffered']
    #allocation11 [shape = 'u8[1024]{0}', space=vmem, size = 0x400, scoped, tag = 'output window, operand 1, single buffered']
    #allocation12 [shape = 's32[1]{0}', space=sflag, size = 0x4, scoped, tag = 'scoped memory for tpu_custom_call.1']
    #allocation13 [shape = 'u8[1024]{0}', space=vmem, size = 0x400, scoped, tag = 'output window, operand 2, single buffered']
    %13 = vsyncpa [#allocation3], 0
    %14 = vsyncpa [#allocation6], 0
    %15 = vsyncpa [#allocation9], 0
    %16 = vsyncpa [#allocation4], 0
    %17 = vsyncpa [#allocation12], 0
    // Predicated region
    $region2: #{tpu_custom_call.1} parent=1 // pred_check
      _
    $region3: #{tpu_custom_call.1} parent=1 // pred_check_branch
      %19 = sbr.rel (0) target = $region5
    $region4: #{tpu_custom_call.1} parent=1 // pred_region
      %s21 = ssub.s32 256, 256
      %22 = vsyncadd [#allocation3], %s21
      %s24 = sshll.u32 [#allocation2], 4
      %s25 = int_to_ptr.vmem [resolvable:$true] %s24
      %27 = dma.hbm_to_vmem [thread:$0]  %s0, 256, %s25, [#allocation3]
    $region5: #{tpu_custom_call.1} parent=1 // pred_fallthru
      _
    // Predicated region
    $region6: #{tpu_custom_call.1} parent=1 // pred_check
      _
    $region7: #{tpu_custom_call.1} parent=1 // pred_check_branch
      %29 = sbr.rel (0) target = $region9
    $region8: #{tpu_custom_call.1} parent=1 // pred_region
      %s31 = ssub.s32 256, 256
      %32 = vsyncadd [#allocation6], %s31
      %s34 = sshll.u32 [#allocation5], 4
      %s35 = int_to_ptr.vmem [resolvable:$true] %s34
      %37 = dma.hbm_to_vmem [thread:$0]  %s1, 256, %s35, [#allocation6]
    $region9: #{tpu_custom_call.1} parent=1 // pred_fallthru
      _
    // Predicated region
    $region10: #{tpu_custom_call.1} parent=1 // pred_check
      _
    $region11: #{tpu_custom_call.1} parent=1 // pred_check_branch
      %39 = sbr.rel (0) target = $region13
    $region12: #{tpu_custom_call.1} parent=1 // pred_region
      %s41 = ssub.s32 256, 256
      %42 = vsyncadd [#allocation6], %s41
      %s44 = sshll.u32 [#allocation7], 4
      %s45 = int_to_ptr.vmem [resolvable:$true] %s44
      %47 = dma.hbm_to_vmem [thread:$0]  %s2, 256, %s45, [#allocation6]
    $region13: #{tpu_custom_call.1} parent=1 // pred_fallthru
      _
    // Predicated region
    $region14: #{tpu_custom_call.1} parent=1 // pred_check
      _
    $region15: #{tpu_custom_call.1} parent=1 // pred_check_branch
      %49 = sbr.rel (0) target = $region17
    $region16: #{tpu_custom_call.1} parent=1 // pred_region
      %s51 = ssub.s32 4096, 4096
      %52 = vsyncadd [#allocation9], %s51
      %s53 = sshll.u32 [#allocation8], 4
      %s54 = int_to_ptr.vmem [resolvable:$true] %s53
      %59 = dma.hbm_to_vmem [thread:$0]  %s3, 4096, %s54, [#allocation9], 1024, 1024, 64
    $region17: #{tpu_custom_call.1} parent=1 // pred_fallthru
      _
    // Predicated region
    $region18: #{tpu_custom_call.1} parent=1 // pred_check
      _
    $region19: #{tpu_custom_call.1} parent=1 // pred_check_branch
      %61 = sbr.rel (0) target = $region21
    $region20: #{tpu_custom_call.1} parent=1 // pred_region
      _
    $region21: #{tpu_custom_call.1} parent=1 // pred_fallthru
      _
    // Predicated region
    $region22: #{tpu_custom_call.1} parent=1 // pred_check
      _
    $region23: #{tpu_custom_call.1} parent=1 // pred_check_branch
      %63 = sbr.rel (0) target = $region25
    $region24: #{tpu_custom_call.1} parent=1 // pred_region
      %64 = dma.done [#allocation3], 256
    $region25: #{tpu_custom_call.1} parent=1 // pred_fallthru
      _
    // Predicated region
    $region26: #{tpu_custom_call.1} parent=1 // pred_check
      _
    $region27: #{tpu_custom_call.1} parent=1 // pred_check_branch
      %66 = sbr.rel (0) target = $region29
    $region28: #{tpu_custom_call.1} parent=1 // pred_region
      %67 = dma.done [#allocation6], 256
    $region29: #{tpu_custom_call.1} parent=1 // pred_fallthru
      _
    // Predicated region
    $region30: #{tpu_custom_call.1} parent=1 // pred_check
      _
    $region31: #{tpu_custom_call.1} parent=1 // pred_check_branch
      %69 = sbr.rel (0) target = $region33
    $region32: #{tpu_custom_call.1} parent=1 // pred_region
      %70 = dma.done [#allocation6], 256
    $region33: #{tpu_custom_call.1} parent=1 // pred_fallthru
      _
    // Predicated region
    $region34: #{tpu_custom_call.1} parent=1 // pred_check
      _
    $region35: #{tpu_custom_call.1} parent=1 // pred_check_branch
      %72 = sbr.rel (0) target = $region37
    $region36: #{tpu_custom_call.1} parent=1 // pred_region
      %73 = dma.done [#allocation9], 4096
    $region37: #{tpu_custom_call.1} parent=1 // pred_fallthru
      _
    %v74 = vld [vmem:[#allocation8] sm:$0xff]
    %v75 = vld [vmem:[#allocation8 + $0x8] sm:$0xff]
    %v76 = vld [vmem:[#allocation8 + $0x10] sm:$0xff]
    %v77 = vld [vmem:[#allocation8 + $0x18] sm:$0xff]
    %v78 = vld [vmem:[#allocation8 + $0x20] sm:$0xff]
    %v79 = vld [vmem:[#allocation8 + $0x28] sm:$0xff]
    %v80 = vld [vmem:[#allocation8 + $0x30] sm:$0xff]
    %v81 = vld [vmem:[#allocation8 + $0x38] sm:$0xff]
    %v82 = vld [vmem:[#allocation8 + $0x40] sm:$0xff]
    %v83 = vld [vmem:[#allocation8 + $0x48] sm:$0xff]
    %v84 = vld [vmem:[#allocation8 + $0x50] sm:$0xff]
    %v85 = vld [vmem:[#allocation8 + $0x58] sm:$0xff]
    %v86 = vld [vmem:[#allocation8 + $0x60] sm:$0xff]
    %v87 = vld [vmem:[#allocation8 + $0x68] sm:$0xff]
    %v88 = vld [vmem:[#allocation8 + $0x70] sm:$0xff]
    %v89 = vld [vmem:[#allocation8 + $0x78] sm:$0xff]
    %v90 = vld [vmem:[#allocation8 + $0x80] sm:$0xff]
    %v91 = vld [vmem:[#allocation8 + $0x88] sm:$0xff]
    %v92 = vld [vmem:[#allocation8 + $0x90] sm:$0xff]
    %v93 = vld [vmem:[#allocation8 + $0x98] sm:$0xff]
    %v94 = vld [vmem:[#allocation8 + $0xa0] sm:$0xff]
    %v95 = vld [vmem:[#allocation8 + $0xa8] sm:$0xff]
    %v96 = vld [vmem:[#allocation8 + $0xb0] sm:$0xff]
    %v97 = vld [vmem:[#allocation8 + $0xb8] sm:$0xff]
    %v98 = vld [vmem:[#allocation8 + $0xc0] sm:$0xff]
    %v99 = vld [vmem:[#allocation8 + $0xc8] sm:$0xff]
    %v100 = vld [vmem:[#allocation8 + $0xd0] sm:$0xff]
    %v101 = vld [vmem:[#allocation8 + $0xd8] sm:$0xff]
    %v102 = vld [vmem:[#allocation8 + $0xe0] sm:$0xff]
    %v103 = vld [vmem:[#allocation8 + $0xe8] sm:$0xff]
    %v104 = vld [vmem:[#allocation8 + $0xf0] sm:$0xff]
    %v105 = vld [vmem:[#allocation8 + $0xf8] sm:$0xff]
    %v106 = vld [vmem:[%s4] sm:$0x1]
    %v107 = vld [vmem:[#allocation2] sm:$0xff]
    %v108 = vld [vmem:[#allocation2 + $0x8] sm:$0xff]
    %v110 = vlaneseq
    %v111 = vshrl.u32 %v110, 7
    %v112 = vsub.s32 0, %v111
    %v113 = vrot.slane %v106, %v112
    %v117 = vcombine.high %v107, %v107
    %v119 = vunpack.c.l.s4 1983009808
    %v120 = vunpack.c.0.s8 %v119
    %v121 = vlaneseq
    %v122 = vshrl.u32 %v121, 7
    %v123 = vsub.s32 %v120, %v122
    %v124 = vrot.slane %v107, %v123
    %v126 = vunpack.c.l.s4 1983009808
    %v127 = vunpack.c.0.s8 %v126
    %v128 = vlaneseq
    %v129 = vshrl.u32 %v128, 7
    %v130 = vsub.s32 %v127, %v129
    %v131 = vrot.slane %v117, %v130
    %v132 = vcombine.high %v124, %v124
    %v133 = vcombine.high %v131, %v131
    %v134 = vcombine.high %v108, %v108
    %v136 = vunpack.c.l.s4 1983009808
    %v137 = vunpack.c.0.s8 %v136
    %v138 = vlaneseq
    %v139 = vshrl.u32 %v138, 7
    %v140 = vsub.s32 %v137, %v139
    %v141 = vrot.slane %v108, %v140
    %v143 = vunpack.c.l.s4 1983009808
    %v144 = vunpack.c.0.s8 %v143
    %v145 = vlaneseq
    %v146 = vshrl.u32 %v145, 7
    %v147 = vsub.s32 %v144, %v146
    %v148 = vrot.slane %v134, %v147
    %v149 = vcombine.high %v141, %v141
    %v150 = vcombine.high %v148, %v148
    %159 = vmatprep.subr.mxu0 %v75
    %160 = vmatpush1.xpose.msra.mxu0 %v74
    %161 = vmatprep.subr.mxu0 %v83
    %162 = vmatpush1.xpose.msra.mxu0 %v82
    %163 = vmatprep.subr.mxu0 %v91
    %164 = vmatpush1.xpose.msra.mxu0 %v90
    %165 = vmatprep.subr.mxu0 %v99
    %166 = vmatpush1.xpose.msra.mxu0 %v98
    %167 = vmatprep.subr.mxu0 0.0
    %168 = vmatpush1.xpose.msra.mxu0 0.0
    %169 = vmatprep.subr.mxu0 0.0
    %170 = vmatpush1.xpose.msra.mxu0 0.0
    %171 = vmatprep.subr.mxu0 0.0
    %172 = vmatpush1.xpose.msra.mxu0 0.0
    %173 = vmatprep.subr.mxu0 0.0
    %174 = vmatpush1.xpose.msra.mxu0 0.0
    %175 = vmatprep.subr.mxu0 0.0
    %176 = vmatpush1.xpose.msra.mxu0 0.0
    %177 = vmatprep.subr.mxu0 0.0
    %178 = vmatpush1.xpose.msra.mxu0 0.0
    %179 = vmatprep.subr.mxu0 0.0
    %180 = vmatpush1.xpose.msra.mxu0 0.0
    %181 = vmatprep.subr.mxu0 0.0
    %182 = vmatpush1.xpose.msra.mxu0 0.0
    %183 = vmatprep.subr.mxu0 0.0
    %184 = vmatpush1.xpose.msra.mxu0 0.0
    %185 = vmatprep.subr.mxu0 0.0
    %186 = vmatpush1.xpose.msra.mxu0 0.0
    %187 = vmatprep.subr.mxu0 0.0
    %188 = vmatpush1.xpose.msra.mxu0 0.0
    %189 = vmatprep.subr.mxu0 0.0
    %190 = vmatpush1.xpose.msra.mxu0 0.0
    %191 = vmatprep.subr.mxu0 0.0
    %192 = vmatpush1.xpose.msra.mxu0 0.0
    %193 = vmatprep.subr.mxu0 0.0
    %194 = vmatpush1.xpose.msra.mxu0 0.0
    %195 = vmatprep.subr.mxu0 0.0
    %196 = vmatpush1.xpose.msra.mxu0 0.0
    %197 = vmatprep.subr.mxu0 0.0
    %198 = vmatpush1.xpose.msra.mxu0 0.0
    %199 = vmatprep.subr.mxu0 0.0
    %200 = vmatpush1.xpose.msra.mxu0 0.0
    %201 = vmatprep.subr.mxu0 0.0
    %202 = vmatpush1.xpose.msra.mxu0 0.0
    %203 = vmatprep.subr.mxu0 0.0
    %204 = vmatpush1.xpose.msra.mxu0 0.0
    %205 = vmatprep.subr.mxu0 0.0
    %206 = vmatpush1.xpose.msra.mxu0 0.0
    %207 = vmatprep.subr.mxu0 0.0
    %208 = vmatpush1.xpose.msra.mxu0 0.0
    %209 = vmatprep.subr.mxu0 0.0
    %210 = vmatpush1.xpose.msra.mxu0 0.0
    %211 = vmatprep.subr.mxu0 0.0
    %212 = vmatpush1.xpose.msra.mxu0 0.0
    %213 = vmatprep.subr.mxu0 0.0
    %214 = vmatpush1.xpose.msra.mxu0 0.0
    %215 = vmatprep.subr.mxu0 0.0
    %216 = vmatpush1.xpose.msra.mxu0 0.0
    %217 = vmatprep.subr.mxu0 0.0
    %218 = vmatpush1.xpose.msra.mxu0 0.0
    %219 = vmatprep.subr.mxu0 0.0
    %220 = vmatpush1.xpose.msra.mxu0 0.0
    %221 = vmatprep.subr.mxu0 0.0
    %222 = vmatpush1.xpose.msra.mxu0 0.0
    %223 = vmatprep.mubr.f32.mxu0 %v132
    %224 = vmatmul.mubr.f32.gmra.mrb[0].mxu0 %v124
    %v225 = vpop.f32.mrb[0].mxu0
    %v226 = vadd.f32 %v113, %v225
    %v227 = vpop.f32.mrb[0].mxu0
    %228 = vdwg.mxu0
    %229 = vmatprep.subr.mxu0 %v77
    %230 = vmatpush1.xpose.msra.mxu0 %v76
    %231 = vmatprep.subr.mxu0 %v85
    %232 = vmatpush1.xpose.msra.mxu0 %v84
    %233 = vmatprep.subr.mxu0 %v93
    %234 = vmatpush1.xpose.msra.mxu0 %v92
    %235 = vmatprep.subr.mxu0 %v101
    %236 = vmatpush1.xpose.msra.mxu0 %v100
    %237 = vmatprep.subr.mxu0 0.0
    %238 = vmatpush1.xpose.msra.mxu0 0.0
    %239 = vmatprep.subr.mxu0 0.0
    %240 = vmatpush1.xpose.msra.mxu0 0.0
    %241 = vmatprep.subr.mxu0 0.0
    %242 = vmatpush1.xpose.msra.mxu0 0.0
    %243 = vmatprep.subr.mxu0 0.0
    %244 = vmatpush1.xpose.msra.mxu0 0.0
    %245 = vmatprep.subr.mxu0 0.0
    %246 = vmatpush1.xpose.msra.mxu0 0.0
    %247 = vmatprep.subr.mxu0 0.0
    %248 = vmatpush1.xpose.msra.mxu0 0.0
    %249 = vmatprep.subr.mxu0 0.0
    %250 = vmatpush1.xpose.msra.mxu0 0.0
    %251 = vmatprep.subr.mxu0 0.0
    %252 = vmatpush1.xpose.msra.mxu0 0.0
    %253 = vmatprep.subr.mxu0 0.0
    %254 = vmatpush1.xpose.msra.mxu0 0.0
    %255 = vmatprep.subr.mxu0 0.0
    %256 = vmatpush1.xpose.msra.mxu0 0.0
    %257 = vmatprep.subr.mxu0 0.0
    %258 = vmatpush1.xpose.msra.mxu0 0.0
    %259 = vmatprep.subr.mxu0 0.0
    %260 = vmatpush1.xpose.msra.mxu0 0.0
    %261 = vmatprep.subr.mxu0 0.0
    %262 = vmatpush1.xpose.msra.mxu0 0.0
    %263 = vmatprep.subr.mxu0 0.0
    %264 = vmatpush1.xpose.msra.mxu0 0.0
    %265 = vmatprep.subr.mxu0 0.0
    %266 = vmatpush1.xpose.msra.mxu0 0.0
    %267 = vmatprep.subr.mxu0 0.0
    %268 = vmatpush1.xpose.msra.mxu0 0.0
    %269 = vmatprep.subr.mxu0 0.0
    %270 = vmatpush1.xpose.msra.mxu0 0.0
    %271 = vmatprep.subr.mxu0 0.0
    %272 = vmatpush1.xpose.msra.mxu0 0.0
    %273 = vmatprep.subr.mxu0 0.0
    %274 = vmatpush1.xpose.msra.mxu0 0.0
    %275 = vmatprep.subr.mxu0 0.0
    %276 = vmatpush1.xpose.msra.mxu0 0.0
    %277 = vmatprep.subr.mxu0 0.0
    %278 = vmatpush1.xpose.msra.mxu0 0.0
    %279 = vmatprep.subr.mxu0 0.0
    %280 = vmatpush1.xpose.msra.mxu0 0.0
    %281 = vmatprep.subr.mxu0 0.0
    %282 = vmatpush1.xpose.msra.mxu0 0.0
    %283 = vmatprep.subr.mxu0 0.0
    %284 = vmatpush1.xpose.msra.mxu0 0.0
    %285 = vmatprep.subr.mxu0 0.0
    %286 = vmatpush1.xpose.msra.mxu0 0.0
    %287 = vmatprep.subr.mxu0 0.0
    %288 = vmatpush1.xpose.msra.mxu0 0.0
    %289 = vmatprep.subr.mxu0 0.0
    %290 = vmatpush1.xpose.msra.mxu0 0.0
    %291 = vmatprep.subr.mxu0 0.0
    %292 = vmatpush1.xpose.msra.mxu0 0.0
    %293 = vmatprep.mubr.f32.mxu0 %v133
    %294 = vmatmul.mubr.f32.gmra.mrb[0].mxu0 %v131
    %v295 = vpop.f32.mrb[0].mxu0
    %v296 = vadd.f32 %v226, %v295
    %v297 = vpop.f32.mrb[0].mxu0
    %298 = vdwg.mxu0
    %299 = vmatprep.subr.mxu0 %v79
    %300 = vmatpush1.xpose.msra.mxu0 %v78
    %301 = vmatprep.subr.mxu0 %v87
    %302 = vmatpush1.xpose.msra.mxu0 %v86
    %303 = vmatprep.subr.mxu0 %v95
    %304 = vmatpush1.xpose.msra.mxu0 %v94
    %305 = vmatprep.subr.mxu0 %v103
    %306 = vmatpush1.xpose.msra.mxu0 %v102
    %307 = vmatprep.subr.mxu0 0.0
    %308 = vmatpush1.xpose.msra.mxu0 0.0
    %309 = vmatprep.subr.mxu0 0.0
    %310 = vmatpush1.xpose.msra.mxu0 0.0
    %311 = vmatprep.subr.mxu0 0.0
    %312 = vmatpush1.xpose.msra.mxu0 0.0
    %313 = vmatprep.subr.mxu0 0.0
    %314 = vmatpush1.xpose.msra.mxu0 0.0
    %315 = vmatprep.subr.mxu0 0.0
    %316 = vmatpush1.xpose.msra.mxu0 0.0
    %317 = vmatprep.subr.mxu0 0.0
    %318 = vmatpush1.xpose.msra.mxu0 0.0
    %319 = vmatprep.subr.mxu0 0.0
    %320 = vmatpush1.xpose.msra.mxu0 0.0
    %321 = vmatprep.subr.mxu0 0.0
    %322 = vmatpush1.xpose.msra.mxu0 0.0
    %323 = vmatprep.subr.mxu0 0.0
    %324 = vmatpush1.xpose.msra.mxu0 0.0
    %325 = vmatprep.subr.mxu0 0.0
    %326 = vmatpush1.xpose.msra.mxu0 0.0
    %327 = vmatprep.subr.mxu0 0.0
    %328 = vmatpush1.xpose.msra.mxu0 0.0
    %329 = vmatprep.subr.mxu0 0.0
    %330 = vmatpush1.xpose.msra.mxu0 0.0
    %331 = vmatprep.subr.mxu0 0.0
    %332 = vmatpush1.xpose.msra.mxu0 0.0
    %333 = vmatprep.subr.mxu0 0.0
    %334 = vmatpush1.xpose.msra.mxu0 0.0
    %335 = vmatprep.subr.mxu0 0.0
    %336 = vmatpush1.xpose.msra.mxu0 0.0
    %337 = vmatprep.subr.mxu0 0.0
    %338 = vmatpush1.xpose.msra.mxu0 0.0
    %339 = vmatprep.subr.mxu0 0.0
    %340 = vmatpush1.xpose.msra.mxu0 0.0
    %341 = vmatprep.subr.mxu0 0.0
    %342 = vmatpush1.xpose.msra.mxu0 0.0
    %343 = vmatprep.subr.mxu0 0.0
    %344 = vmatpush1.xpose.msra.mxu0 0.0
    %345 = vmatprep.subr.mxu0 0.0
    %346 = vmatpush1.xpose.msra.mxu0 0.0
    %347 = vmatprep.subr.mxu0 0.0
    %348 = vmatpush1.xpose.msra.mxu0 0.0
    %349 = vmatprep.subr.mxu0 0.0
    %350 = vmatpush1.xpose.msra.mxu0 0.0
    %351 = vmatprep.subr.mxu0 0.0
    %352 = vmatpush1.xpose.msra.mxu0 0.0
    %353 = vmatprep.subr.mxu0 0.0
    %354 = vmatpush1.xpose.msra.mxu0 0.0
    %355 = vmatprep.subr.mxu0 0.0
    %356 = vmatpush1.xpose.msra.mxu0 0.0
    %357 = vmatprep.subr.mxu0 0.0
    %358 = vmatpush1.xpose.msra.mxu0 0.0
    %359 = vmatprep.subr.mxu0 0.0
    %360 = vmatpush1.xpose.msra.mxu0 0.0
    %361 = vmatprep.subr.mxu0 0.0
    %362 = vmatpush1.xpose.msra.mxu0 0.0
    %363 = vmatprep.mubr.f32.mxu0 %v149
    %364 = vmatmul.mubr.f32.gmra.mrb[0].mxu0 %v141
    %v365 = vpop.f32.mrb[0].mxu0
    %v366 = vadd.f32 %v296, %v365
    %v367 = vpop.f32.mrb[0].mxu0
    %368 = vdwg.mxu0
    %369 = vmatprep.subr.mxu0 %v81
    %370 = vmatpush1.xpose.msra.mxu0 %v80
    %371 = vmatprep.subr.mxu0 %v89
    %372 = vmatpush1.xpose.msra.mxu0 %v88
    %373 = vmatprep.subr.mxu0 %v97
    %374 = vmatpush1.xpose.msra.mxu0 %v96
    %375 = vmatprep.subr.mxu0 %v105
    %376 = vmatpush1.xpose.msra.mxu0 %v104
    %377 = vmatprep.subr.mxu0 0.0
    %378 = vmatpush1.xpose.msra.mxu0 0.0
    %379 = vmatprep.subr.mxu0 0.0
    %380 = vmatpush1.xpose.msra.mxu0 0.0
    %381 = vmatprep.subr.mxu0 0.0
    %382 = vmatpush1.xpose.msra.mxu0 0.0
    %383 = vmatprep.subr.mxu0 0.0
    %384 = vmatpush1.xpose.msra.mxu0 0.0
    %385 = vmatprep.subr.mxu0 0.0
    %386 = vmatpush1.xpose.msra.mxu0 0.0
    %387 = vmatprep.subr.mxu0 0.0
    %388 = vmatpush1.xpose.msra.mxu0 0.0
    %389 = vmatprep.subr.mxu0 0.0
    %390 = vmatpush1.xpose.msra.mxu0 0.0
    %391 = vmatprep.subr.mxu0 0.0
    %392 = vmatpush1.xpose.msra.mxu0 0.0
    %393 = vmatprep.subr.mxu0 0.0
    %394 = vmatpush1.xpose.msra.mxu0 0.0
    %395 = vmatprep.subr.mxu0 0.0
    %396 = vmatpush1.xpose.msra.mxu0 0.0
    %397 = vmatprep.subr.mxu0 0.0
    %398 = vmatpush1.xpose.msra.mxu0 0.0
    %399 = vmatprep.subr.mxu0 0.0
    %400 = vmatpush1.xpose.msra.mxu0 0.0
    %401 = vmatprep.subr.mxu0 0.0
    %402 = vmatpush1.xpose.msra.mxu0 0.0
    %403 = vmatprep.subr.mxu0 0.0
    %404 = vmatpush1.xpose.msra.mxu0 0.0
    %405 = vmatprep.subr.mxu0 0.0
    %406 = vmatpush1.xpose.msra.mxu0 0.0
    %407 = vmatprep.subr.mxu0 0.0
    %408 = vmatpush1.xpose.msra.mxu0 0.0
    %409 = vmatprep.subr.mxu0 0.0
    %410 = vmatpush1.xpose.msra.mxu0 0.0
    %411 = vmatprep.subr.mxu0 0.0
    %412 = vmatpush1.xpose.msra.mxu0 0.0
    %413 = vmatprep.subr.mxu0 0.0
    %414 = vmatpush1.xpose.msra.mxu0 0.0
    %415 = vmatprep.subr.mxu0 0.0
    %416 = vmatpush1.xpose.msra.mxu0 0.0
    %417 = vmatprep.subr.mxu0 0.0
    %418 = vmatpush1.xpose.msra.mxu0 0.0
    %419 = vmatprep.subr.mxu0 0.0
    %420 = vmatpush1.xpose.msra.mxu0 0.0
    %421 = vmatprep.subr.mxu0 0.0
    %422 = vmatpush1.xpose.msra.mxu0 0.0
    %423 = vmatprep.subr.mxu0 0.0
    %424 = vmatpush1.xpose.msra.mxu0 0.0
    %425 = vmatprep.subr.mxu0 0.0
    %426 = vmatpush1.xpose.msra.mxu0 0.0
    %427 = vmatprep.subr.mxu0 0.0
    %428 = vmatpush1.xpose.msra.mxu0 0.0
    %429 = vmatprep.subr.mxu0 0.0
    %430 = vmatpush1.xpose.msra.mxu0 0.0
    %431 = vmatprep.subr.mxu0 0.0
    %432 = vmatpush1.xpose.msra.mxu0 0.0
    %433 = vmatprep.mubr.f32.mxu0 %v150
    %434 = vmatmul.mubr.f32.gmra.mrb[0].mxu0 %v148
    %v435 = vpop.f32.mrb[0].mxu0
    %v436 = vadd.f32 %v366, %v435
    %v437 = vpop.f32.mrb[0].mxu0
    %438 = vdwg.mxu0
    %v439 = vmul.f32 %v436, 2.0
    %v440 = vmin.f32 %v436, %v439
    %vm441 = vcmask 254976
    %442 = vst.msk [vmem:[#allocation10] sm:$0x3] %vm441, %v440
    %v443 = vld [vmem:[#allocation5] sm:$0xff]
    %v444 = vld [vmem:[#allocation5 + $0x8] sm:$0xff]
    %v447 = vcombine.high %v443, %v443
    %v449 = vunpack.c.l.s4 1983009808
    %v450 = vunpack.c.0.s8 %v449
    %v451 = vlaneseq
    %v452 = vshrl.u32 %v451, 7
    %v453 = vsub.s32 %v450, %v452
    %v454 = vrot.slane %v443, %v453
    %v456 = vunpack.c.l.s4 1983009808
    %v457 = vunpack.c.0.s8 %v456
    %v458 = vlaneseq
    %v459 = vshrl.u32 %v458, 7
    %v460 = vsub.s32 %v457, %v459
    %v461 = vrot.slane %v447, %v460
    %v462 = vcombine.high %v454, %v454
    %v463 = vcombine.high %v461, %v461
    %v464 = vcombine.high %v444, %v444
    %v466 = vunpack.c.l.s4 1983009808
    %v467 = vunpack.c.0.s8 %v466
    %v468 = vlaneseq
    %v469 = vshrl.u32 %v468, 7
    %v470 = vsub.s32 %v467, %v469
    %v471 = vrot.slane %v444, %v470
    %v473 = vunpack.c.l.s4 1983009808
    %v474 = vunpack.c.0.s8 %v473
    %v475 = vlaneseq
    %v476 = vshrl.u32 %v475, 7
    %v477 = vsub.s32 %v474, %v476
    %v478 = vrot.slane %v464, %v477
    %v479 = vcombine.high %v471, %v471
    %v480 = vcombine.high %v478, %v478
    %489 = vmatprep.subr.mxu0 %v75
    %490 = vmatpush1.xpose.msra.mxu0 %v74
    %491 = vmatprep.subr.mxu0 %v83
    %492 = vmatpush1.xpose.msra.mxu0 %v82
    %493 = vmatprep.subr.mxu0 %v91
    %494 = vmatpush1.xpose.msra.mxu0 %v90
    %495 = vmatprep.subr.mxu0 %v99
    %496 = vmatpush1.xpose.msra.mxu0 %v98
    %497 = vmatprep.subr.mxu0 0.0
    %498 = vmatpush1.xpose.msra.mxu0 0.0
    %499 = vmatprep.subr.mxu0 0.0
    %500 = vmatpush1.xpose.msra.mxu0 0.0
    %501 = vmatprep.subr.mxu0 0.0
    %502 = vmatpush1.xpose.msra.mxu0 0.0
    %503 = vmatprep.subr.mxu0 0.0
    %504 = vmatpush1.xpose.msra.mxu0 0.0
    %505 = vmatprep.subr.mxu0 0.0
    %506 = vmatpush1.xpose.msra.mxu0 0.0
    %507 = vmatprep.subr.mxu0 0.0
    %508 = vmatpush1.xpose.msra.mxu0 0.0
    %509 = vmatprep.subr.mxu0 0.0
    %510 = vmatpush1.xpose.msra.mxu0 0.0
    %511 = vmatprep.subr.mxu0 0.0
    %512 = vmatpush1.xpose.msra.mxu0 0.0
    %513 = vmatprep.subr.mxu0 0.0
    %514 = vmatpush1.xpose.msra.mxu0 0.0
    %515 = vmatprep.subr.mxu0 0.0
    %516 = vmatpush1.xpose.msra.mxu0 0.0
    %517 = vmatprep.subr.mxu0 0.0
    %518 = vmatpush1.xpose.msra.mxu0 0.0
    %519 = vmatprep.subr.mxu0 0.0
    %520 = vmatpush1.xpose.msra.mxu0 0.0
    %521 = vmatprep.subr.mxu0 0.0
    %522 = vmatpush1.xpose.msra.mxu0 0.0
    %523 = vmatprep.subr.mxu0 0.0
    %524 = vmatpush1.xpose.msra.mxu0 0.0
    %525 = vmatprep.subr.mxu0 0.0
    %526 = vmatpush1.xpose.msra.mxu0 0.0
    %527 = vmatprep.subr.mxu0 0.0
    %528 = vmatpush1.xpose.msra.mxu0 0.0
    %529 = vmatprep.subr.mxu0 0.0
    %530 = vmatpush1.xpose.msra.mxu0 0.0
    %531 = vmatprep.subr.mxu0 0.0
    %532 = vmatpush1.xpose.msra.mxu0 0.0
    %533 = vmatprep.subr.mxu0 0.0
    %534 = vmatpush1.xpose.msra.mxu0 0.0
    %535 = vmatprep.subr.mxu0 0.0
    %536 = vmatpush1.xpose.msra.mxu0 0.0
    %537 = vmatprep.subr.mxu0 0.0
    %538 = vmatpush1.xpose.msra.mxu0 0.0
    %539 = vmatprep.subr.mxu0 0.0
    %540 = vmatpush1.xpose.msra.mxu0 0.0
    %541 = vmatprep.subr.mxu0 0.0
    %542 = vmatpush1.xpose.msra.mxu0 0.0
    %543 = vmatprep.subr.mxu0 0.0
    %544 = vmatpush1.xpose.msra.mxu0 0.0
    %545 = vmatprep.subr.mxu0 0.0
    %546 = vmatpush1.xpose.msra.mxu0 0.0
    %547 = vmatprep.subr.mxu0 0.0
    %548 = vmatpush1.xpose.msra.mxu0 0.0
    %549 = vmatprep.subr.mxu0 0.0
    %550 = vmatpush1.xpose.msra.mxu0 0.0
    %551 = vmatprep.subr.mxu0 0.0
    %552 = vmatpush1.xpose.msra.mxu0 0.0
    %553 = vmatprep.mubr.f32.mxu0 %v462
    %554 = vmatmul.mubr.f32.gmra.mrb[0].mxu0 %v454
    %v555 = vpop.f32.mrb[0].mxu0
    %v556 = vadd.f32 %v113, %v555
    %v557 = vpop.f32.mrb[0].mxu0
    %558 = vdwg.mxu0
    %559 = vmatprep.subr.mxu0 %v77
    %560 = vmatpush1.xpose.msra.mxu0 %v76
    %561 = vmatprep.subr.mxu0 %v85
    %562 = vmatpush1.xpose.msra.mxu0 %v84
    %563 = vmatprep.subr.mxu0 %v93
    %564 = vmatpush1.xpose.msra.mxu0 %v92
    %565 = vmatprep.subr.mxu0 %v101
    %566 = vmatpush1.xpose.msra.mxu0 %v100
    %567 = vmatprep.subr.mxu0 0.0
    %568 = vmatpush1.xpose.msra.mxu0 0.0
    %569 = vmatprep.subr.mxu0 0.0
    %570 = vmatpush1.xpose.msra.mxu0 0.0
    %571 = vmatprep.subr.mxu0 0.0
    %572 = vmatpush1.xpose.msra.mxu0 0.0
    %573 = vmatprep.subr.mxu0 0.0
    %574 = vmatpush1.xpose.msra.mxu0 0.0
    %575 = vmatprep.subr.mxu0 0.0
    %576 = vmatpush1.xpose.msra.mxu0 0.0
    %577 = vmatprep.subr.mxu0 0.0
    %578 = vmatpush1.xpose.msra.mxu0 0.0
    %579 = vmatprep.subr.mxu0 0.0
    %580 = vmatpush1.xpose.msra.mxu0 0.0
    %581 = vmatprep.subr.mxu0 0.0
    %582 = vmatpush1.xpose.msra.mxu0 0.0
    %583 = vmatprep.subr.mxu0 0.0
    %584 = vmatpush1.xpose.msra.mxu0 0.0
    %585 = vmatprep.subr.mxu0 0.0
    %586 = vmatpush1.xpose.msra.mxu0 0.0
    %587 = vmatprep.subr.mxu0 0.0
    %588 = vmatpush1.xpose.msra.mxu0 0.0
    %589 = vmatprep.subr.mxu0 0.0
    %590 = vmatpush1.xpose.msra.mxu0 0.0
    %591 = vmatprep.subr.mxu0 0.0
    %592 = vmatpush1.xpose.msra.mxu0 0.0
    %593 = vmatprep.subr.mxu0 0.0
    %594 = vmatpush1.xpose.msra.mxu0 0.0
    %595 = vmatprep.subr.mxu0 0.0
    %596 = vmatpush1.xpose.msra.mxu0 0.0
    %597 = vmatprep.subr.mxu0 0.0
    %598 = vmatpush1.xpose.msra.mxu0 0.0
    %599 = vmatprep.subr.mxu0 0.0
    %600 = vmatpush1.xpose.msra.mxu0 0.0
    %601 = vmatprep.subr.mxu0 0.0
    %602 = vmatpush1.xpose.msra.mxu0 0.0
    %603 = vmatprep.subr.mxu0 0.0
    %604 = vmatpush1.xpose.msra.mxu0 0.0
    %605 = vmatprep.subr.mxu0 0.0
    %606 = vmatpush1.xpose.msra.mxu0 0.0
    %607 = vmatprep.subr.mxu0 0.0
    %608 = vmatpush1.xpose.msra.mxu0 0.0
    %609 = vmatprep.subr.mxu0 0.0
    %610 = vmatpush1.xpose.msra.mxu0 0.0
    %611 = vmatprep.subr.mxu0 0.0
    %612 = vmatpush1.xpose.msra.mxu0 0.0
    %613 = vmatprep.subr.mxu0 0.0
    %614 = vmatpush1.xpose.msra.mxu0 0.0
    %615 = vmatprep.subr.mxu0 0.0
    %616 = vmatpush1.xpose.msra.mxu0 0.0
    %617 = vmatprep.subr.mxu0 0.0
    %618 = vmatpush1.xpose.msra.mxu0 0.0
    %619 = vmatprep.subr.mxu0 0.0
    %620 = vmatpush1.xpose.msra.mxu0 0.0
    %621 = vmatprep.subr.mxu0 0.0
    %622 = vmatpush1.xpose.msra.mxu0 0.0
    %623 = vmatprep.mubr.f32.mxu0 %v463
    %624 = vmatmul.mubr.f32.gmra.mrb[0].mxu0 %v461
    %v625 = vpop.f32.mrb[0].mxu0
    %v626 = vadd.f32 %v556, %v625
    %v627 = vpop.f32.mrb[0].mxu0
    %628 = vdwg.mxu0
    %629 = vmatprep.subr.mxu0 %v79
    %630 = vmatpush1.xpose.msra.mxu0 %v78
    %631 = vmatprep.subr.mxu0 %v87
    %632 = vmatpush1.xpose.msra.mxu0 %v86
    %633 = vmatprep.subr.mxu0 %v95
    %634 = vmatpush1.xpose.msra.mxu0 %v94
    %635 = vmatprep.subr.mxu0 %v103
    %636 = vmatpush1.xpose.msra.mxu0 %v102
    %637 = vmatprep.subr.mxu0 0.0
    %638 = vmatpush1.xpose.msra.mxu0 0.0
    %639 = vmatprep.subr.mxu0 0.0
    %640 = vmatpush1.xpose.msra.mxu0 0.0
    %641 = vmatprep.subr.mxu0 0.0
    %642 = vmatpush1.xpose.msra.mxu0 0.0
    %643 = vmatprep.subr.mxu0 0.0
    %644 = vmatpush1.xpose.msra.mxu0 0.0
    %645 = vmatprep.subr.mxu0 0.0
    %646 = vmatpush1.xpose.msra.mxu0 0.0
    %647 = vmatprep.subr.mxu0 0.0
    %648 = vmatpush1.xpose.msra.mxu0 0.0
    %649 = vmatprep.subr.mxu0 0.0
    %650 = vmatpush1.xpose.msra.mxu0 0.0
    %651 = vmatprep.subr.mxu0 0.0
    %652 = vmatpush1.xpose.msra.mxu0 0.0
    %653 = vmatprep.subr.mxu0 0.0
    %654 = vmatpush1.xpose.msra.mxu0 0.0
    %655 = vmatprep.subr.mxu0 0.0
    %656 = vmatpush1.xpose.msra.mxu0 0.0
    %657 = vmatprep.subr.mxu0 0.0
    %658 = vmatpush1.xpose.msra.mxu0 0.0
    %659 = vmatprep.subr.mxu0 0.0
    %660 = vmatpush1.xpose.msra.mxu0 0.0
    %661 = vmatprep.subr.mxu0 0.0
    %662 = vmatpush1.xpose.msra.mxu0 0.0
    %663 = vmatprep.subr.mxu0 0.0
    %664 = vmatpush1.xpose.msra.mxu0 0.0
    %665 = vmatprep.subr.mxu0 0.0
    %666 = vmatpush1.xpose.msra.mxu0 0.0
    %667 = vmatprep.subr.mxu0 0.0
    %668 = vmatpush1.xpose.msra.mxu0 0.0
    %669 = vmatprep.subr.mxu0 0.0
    %670 = vmatpush1.xpose.msra.mxu0 0.0
    %671 = vmatprep.subr.mxu0 0.0
    %672 = vmatpush1.xpose.msra.mxu0 0.0
    %673 = vmatprep.subr.mxu0 0.0
    %674 = vmatpush1.xpose.msra.mxu0 0.0
    %675 = vmatprep.subr.mxu0 0.0
    %676 = vmatpush1.xpose.msra.mxu0 0.0
    %677 = vmatprep.subr.mxu0 0.0
    %678 = vmatpush1.xpose.msra.mxu0 0.0
    %679 = vmatprep.subr.mxu0 0.0
    %680 = vmatpush1.xpose.msra.mxu0 0.0
    %681 = vmatprep.subr.mxu0 0.0
    %682 = vmatpush1.xpose.msra.mxu0 0.0
    %683 = vmatprep.subr.mxu0 0.0
    %684 = vmatpush1.xpose.msra.mxu0 0.0
    %685 = vmatprep.subr.mxu0 0.0
    %686 = vmatpush1.xpose.msra.mxu0 0.0
    %687 = vmatprep.subr.mxu0 0.0
    %688 = vmatpush1.xpose.msra.mxu0 0.0
    %689 = vmatprep.subr.mxu0 0.0
    %690 = vmatpush1.xpose.msra.mxu0 0.0
    %691 = vmatprep.subr.mxu0 0.0
    %692 = vmatpush1.xpose.msra.mxu0 0.0
    %693 = vmatprep.mubr.f32.mxu0 %v479
    %694 = vmatmul.mubr.f32.gmra.mrb[0].mxu0 %v471
    %v695 = vpop.f32.mrb[0].mxu0
    %v696 = vadd.f32 %v626, %v695
    %v697 = vpop.f32.mrb[0].mxu0
    %698 = vdwg.mxu0
    %699 = vmatprep.subr.mxu0 %v81
    %700 = vmatpush1.xpose.msra.mxu0 %v80
    %701 = vmatprep.subr.mxu0 %v89
    %702 = vmatpush1.xpose.msra.mxu0 %v88
    %703 = vmatprep.subr.mxu0 %v97
    %704 = vmatpush1.xpose.msra.mxu0 %v96
    %705 = vmatprep.subr.mxu0 %v105
    %706 = vmatpush1.xpose.msra.mxu0 %v104
    %707 = vmatprep.subr.mxu0 0.0
    %708 = vmatpush1.xpose.msra.mxu0 0.0
    %709 = vmatprep.subr.mxu0 0.0
    %710 = vmatpush1.xpose.msra.mxu0 0.0
    %711 = vmatprep.subr.mxu0 0.0
    %712 = vmatpush1.xpose.msra.mxu0 0.0
    %713 = vmatprep.subr.mxu0 0.0
    %714 = vmatpush1.xpose.msra.mxu0 0.0
    %715 = vmatprep.subr.mxu0 0.0
    %716 = vmatpush1.xpose.msra.mxu0 0.0
    %717 = vmatprep.subr.mxu0 0.0
    %718 = vmatpush1.xpose.msra.mxu0 0.0
    %719 = vmatprep.subr.mxu0 0.0
    %720 = vmatpush1.xpose.msra.mxu0 0.0
    %721 = vmatprep.subr.mxu0 0.0
    %722 = vmatpush1.xpose.msra.mxu0 0.0
    %723 = vmatprep.subr.mxu0 0.0
    %724 = vmatpush1.xpose.msra.mxu0 0.0
    %725 = vmatprep.subr.mxu0 0.0
    %726 = vmatpush1.xpose.msra.mxu0 0.0
    %727 = vmatprep.subr.mxu0 0.0
    %728 = vmatpush1.xpose.msra.mxu0 0.0
    %729 = vmatprep.subr.mxu0 0.0
    %730 = vmatpush1.xpose.msra.mxu0 0.0
    %731 = vmatprep.subr.mxu0 0.0
    %732 = vmatpush1.xpose.msra.mxu0 0.0
    %733 = vmatprep.subr.mxu0 0.0
    %734 = vmatpush1.xpose.msra.mxu0 0.0
    %735 = vmatprep.subr.mxu0 0.0
    %736 = vmatpush1.xpose.msra.mxu0 0.0
    %737 = vmatprep.subr.mxu0 0.0
    %738 = vmatpush1.xpose.msra.mxu0 0.0
    %739 = vmatprep.subr.mxu0 0.0
    %740 = vmatpush1.xpose.msra.mxu0 0.0
    %741 = vmatprep.subr.mxu0 0.0
    %742 = vmatpush1.xpose.msra.mxu0 0.0
    %743 = vmatprep.subr.mxu0 0.0
    %744 = vmatpush1.xpose.msra.mxu0 0.0
    %745 = vmatprep.subr.mxu0 0.0
    %746 = vmatpush1.xpose.msra.mxu0 0.0
    %747 = vmatprep.subr.mxu0 0.0
    %748 = vmatpush1.xpose.msra.mxu0 0.0
    %749 = vmatprep.subr.mxu0 0.0
    %750 = vmatpush1.xpose.msra.mxu0 0.0
    %751 = vmatprep.subr.mxu0 0.0
    %752 = vmatpush1.xpose.msra.mxu0 0.0
    %753 = vmatprep.subr.mxu0 0.0
    %754 = vmatpush1.xpose.msra.mxu0 0.0
    %755 = vmatprep.subr.mxu0 0.0
    %756 = vmatpush1.xpose.msra.mxu0 0.0
    %757 = vmatprep.subr.mxu0 0.0
    %758 = vmatpush1.xpose.msra.mxu0 0.0
    %759 = vmatprep.subr.mxu0 0.0
    %760 = vmatpush1.xpose.msra.mxu0 0.0
    %761 = vmatprep.subr.mxu0 0.0
    %762 = vmatpush1.xpose.msra.mxu0 0.0
    %763 = vmatprep.mubr.f32.mxu0 %v480
    %764 = vmatmul.mubr.f32.gmra.mrb[0].mxu0 %v478
    %v765 = vpop.f32.mrb[0].mxu0
    %v766 = vadd.f32 %v696, %v765
    %v767 = vpop.f32.mrb[0].mxu0
    %768 = vdwg.mxu0
    %v769 = vmul.f32 %v766, 2.0
    %v770 = vmin.f32 %v766, %v769
    %771 = vst.msk [vmem:[#allocation11] sm:$0x3] %vm441, %v770
    %v772 = vld [vmem:[#allocation7] sm:$0xff]
    %v773 = vld [vmem:[#allocation7 + $0x8] sm:$0xff]
    %v776 = vcombine.high %v772, %v772
    %v778 = vunpack.c.l.s4 1983009808
    %v779 = vunpack.c.0.s8 %v778
    %v780 = vlaneseq
    %v781 = vshrl.u32 %v780, 7
    %v782 = vsub.s32 %v779, %v781
    %v783 = vrot.slane %v772, %v782
    %v785 = vunpack.c.l.s4 1983009808
    %v786 = vunpack.c.0.s8 %v785
    %v787 = vlaneseq
    %v788 = vshrl.u32 %v787, 7
    %v789 = vsub.s32 %v786, %v788
    %v790 = vrot.slane %v776, %v789
    %v791 = vcombine.high %v783, %v783
    %v792 = vcombine.high %v790, %v790
    %v793 = vcombine.high %v773, %v773
    %v795 = vunpack.c.l.s4 1983009808
    %v796 = vunpack.c.0.s8 %v795
    %v797 = vlaneseq
    %v798 = vshrl.u32 %v797, 7
    %v799 = vsub.s32 %v796, %v798
    %v800 = vrot.slane %v773, %v799
    %v802 = vunpack.c.l.s4 1983009808
    %v803 = vunpack.c.0.s8 %v802
    %v804 = vlaneseq
    %v805 = vshrl.u32 %v804, 7
    %v806 = vsub.s32 %v803, %v805
    %v807 = vrot.slane %v793, %v806
    %v808 = vcombine.high %v800, %v800
    %v809 = vcombine.high %v807, %v807
    %818 = vmatprep.subr.mxu0 %v75
    %819 = vmatpush1.xpose.msra.mxu0 %v74
    %820 = vmatprep.subr.mxu0 %v83
    %821 = vmatpush1.xpose.msra.mxu0 %v82
    %822 = vmatprep.subr.mxu0 %v91
    %823 = vmatpush1.xpose.msra.mxu0 %v90
    %824 = vmatprep.subr.mxu0 %v99
    %825 = vmatpush1.xpose.msra.mxu0 %v98
    %826 = vmatprep.subr.mxu0 0.0
    %827 = vmatpush1.xpose.msra.mxu0 0.0
    %828 = vmatprep.subr.mxu0 0.0
    %829 = vmatpush1.xpose.msra.mxu0 0.0
    %830 = vmatprep.subr.mxu0 0.0
    %831 = vmatpush1.xpose.msra.mxu0 0.0
    %832 = vmatprep.subr.mxu0 0.0
    %833 = vmatpush1.xpose.msra.mxu0 0.0
    %834 = vmatprep.subr.mxu0 0.0
    %835 = vmatpush1.xpose.msra.mxu0 0.0
    %836 = vmatprep.subr.mxu0 0.0
    %837 = vmatpush1.xpose.msra.mxu0 0.0
    %838 = vmatprep.subr.mxu0 0.0
    %839 = vmatpush1.xpose.msra.mxu0 0.0
    %840 = vmatprep.subr.mxu0 0.0
    %841 = vmatpush1.xpose.msra.mxu0 0.0
    %842 = vmatprep.subr.mxu0 0.0
    %843 = vmatpush1.xpose.msra.mxu0 0.0
    %844 = vmatprep.subr.mxu0 0.0
    %845 = vmatpush1.xpose.msra.mxu0 0.0
    %846 = vmatprep.subr.mxu0 0.0
    %847 = vmatpush1.xpose.msra.mxu0 0.0
    %848 = vmatprep.subr.mxu0 0.0
    %849 = vmatpush1.xpose.msra.mxu0 0.0
    %850 = vmatprep.subr.mxu0 0.0
    %851 = vmatpush1.xpose.msra.mxu0 0.0
    %852 = vmatprep.subr.mxu0 0.0
    %853 = vmatpush1.xpose.msra.mxu0 0.0
    %854 = vmatprep.subr.mxu0 0.0
    %855 = vmatpush1.xpose.msra.mxu0 0.0
    %856 = vmatprep.subr.mxu0 0.0
    %857 = vmatpush1.xpose.msra.mxu0 0.0
    %858 = vmatprep.subr.mxu0 0.0
    %859 = vmatpush1.xpose.msra.mxu0 0.0
    %860 = vmatprep.subr.mxu0 0.0
    %861 = vmatpush1.xpose.msra.mxu0 0.0
    %862 = vmatprep.subr.mxu0 0.0
    %863 = vmatpush1.xpose.msra.mxu0 0.0
    %864 = vmatprep.subr.mxu0 0.0
    %865 = vmatpush1.xpose.msra.mxu0 0.0
    %866 = vmatprep.subr.mxu0 0.0
    %867 = vmatpush1.xpose.msra.mxu0 0.0
    %868 = vmatprep.subr.mxu0 0.0
    %869 = vmatpush1.xpose.msra.mxu0 0.0
    %870 = vmatprep.subr.mxu0 0.0
    %871 = vmatpush1.xpose.msra.mxu0 0.0
    %872 = vmatprep.subr.mxu0 0.0
    %873 = vmatpush1.xpose.msra.mxu0 0.0
    %874 = vmatprep.subr.mxu0 0.0
    %875 = vmatpush1.xpose.msra.mxu0 0.0
    %876 = vmatprep.subr.mxu0 0.0
    %877 = vmatpush1.xpose.msra.mxu0 0.0
    %878 = vmatprep.subr.mxu0 0.0
    %879 = vmatpush1.xpose.msra.mxu0 0.0
    %880 = vmatprep.subr.mxu0 0.0
    %881 = vmatpush1.xpose.msra.mxu0 0.0
    %882 = vmatprep.mubr.f32.mxu0 %v791
    %883 = vmatmul.mubr.f32.gmra.mrb[0].mxu0 %v783
    %v884 = vpop.f32.mrb[0].mxu0
    %v885 = vadd.f32 %v113, %v884
    %v886 = vpop.f32.mrb[0].mxu0
    %887 = vdwg.mxu0
    %888 = vmatprep.subr.mxu0 %v77
    %889 = vmatpush1.xpose.msra.mxu0 %v76
    %890 = vmatprep.subr.mxu0 %v85
    %891 = vmatpush1.xpose.msra.mxu0 %v84
    %892 = vmatprep.subr.mxu0 %v93
    %893 = vmatpush1.xpose.msra.mxu0 %v92
    %894 = vmatprep.subr.mxu0 %v101
    %895 = vmatpush1.xpose.msra.mxu0 %v100
    %896 = vmatprep.subr.mxu0 0.0
    %897 = vmatpush1.xpose.msra.mxu0 0.0
    %898 = vmatprep.subr.mxu0 0.0
    %899 = vmatpush1.xpose.msra.mxu0 0.0
    %900 = vmatprep.subr.mxu0 0.0
    %901 = vmatpush1.xpose.msra.mxu0 0.0
    %902 = vmatprep.subr.mxu0 0.0
    %903 = vmatpush1.xpose.msra.mxu0 0.0
    %904 = vmatprep.subr.mxu0 0.0
    %905 = vmatpush1.xpose.msra.mxu0 0.0
    %906 = vmatprep.subr.mxu0 0.0
    %907 = vmatpush1.xpose.msra.mxu0 0.0
    %908 = vmatprep.subr.mxu0 0.0
    %909 = vmatpush1.xpose.msra.mxu0 0.0
    %910 = vmatprep.subr.mxu0 0.0
    %911 = vmatpush1.xpose.msra.mxu0 0.0
    %912 = vmatprep.subr.mxu0 0.0
    %913 = vmatpush1.xpose.msra.mxu0 0.0
    %914 = vmatprep.subr.mxu0 0.0
    %915 = vmatpush1.xpose.msra.mxu0 0.0
    %916 = vmatprep.subr.mxu0 0.0
    %917 = vmatpush1.xpose.msra.mxu0 0.0
    %918 = vmatprep.subr.mxu0 0.0
    %919 = vmatpush1.xpose.msra.mxu0 0.0
    %920 = vmatprep.subr.mxu0 0.0
    %921 = vmatpush1.xpose.msra.mxu0 0.0
    %922 = vmatprep.subr.mxu0 0.0
    %923 = vmatpush1.xpose.msra.mxu0 0.0
    %924 = vmatprep.subr.mxu0 0.0
    %925 = vmatpush1.xpose.msra.mxu0 0.0
    %926 = vmatprep.subr.mxu0 0.0
    %927 = vmatpush1.xpose.msra.mxu0 0.0
    %928 = vmatprep.subr.mxu0 0.0
    %929 = vmatpush1.xpose.msra.mxu0 0.0
    %930 = vmatprep.subr.mxu0 0.0
    %931 = vmatpush1.xpose.msra.mxu0 0.0
    %932 = vmatprep.subr.mxu0 0.0
    %933 = vmatpush1.xpose.msra.mxu0 0.0
    %934 = vmatprep.subr.mxu0 0.0
    %935 = vmatpush1.xpose.msra.mxu0 0.0
    %936 = vmatprep.subr.mxu0 0.0
    %937 = vmatpush1.xpose.msra.mxu0 0.0
    %938 = vmatprep.subr.mxu0 0.0
    %939 = vmatpush1.xpose.msra.mxu0 0.0
    %940 = vmatprep.subr.mxu0 0.0
    %941 = vmatpush1.xpose.msra.mxu0 0.0
    %942 = vmatprep.subr.mxu0 0.0
    %943 = vmatpush1.xpose.msra.mxu0 0.0
    %944 = vmatprep.subr.mxu0 0.0
    %945 = vmatpush1.xpose.msra.mxu0 0.0
    %946 = vmatprep.subr.mxu0 0.0
    %947 = vmatpush1.xpose.msra.mxu0 0.0
    %948 = vmatprep.subr.mxu0 0.0
    %949 = vmatpush1.xpose.msra.mxu0 0.0
    %950 = vmatprep.subr.mxu0 0.0
    %951 = vmatpush1.xpose.msra.mxu0 0.0
    %952 = vmatprep.mubr.f32.mxu0 %v792
    %953 = vmatmul.mubr.f32.gmra.mrb[0].mxu0 %v790
    %v954 = vpop.f32.mrb[0].mxu0
    %v955 = vadd.f32 %v885, %v954
    %v956 = vpop.f32.mrb[0].mxu0
    %957 = vdwg.mxu0
    %958 = vmatprep.subr.mxu0 %v79
    %959 = vmatpush1.xpose.msra.mxu0 %v78
    %960 = vmatprep.subr.mxu0 %v87
    %961 = vmatpush1.xpose.msra.mxu0 %v86
    %962 = vmatprep.subr.mxu0 %v95
    %963 = vmatpush1.xpose.msra.mxu0 %v94
    %964 = vmatprep.subr.mxu0 %v103
    %965 = vmatpush1.xpose.msra.mxu0 %v102
    %966 = vmatprep.subr.mxu0 0.0
    %967 = vmatpush1.xpose.msra.mxu0 0.0
    %968 = vmatprep.subr.mxu0 0.0
    %969 = vmatpush1.xpose.msra.mxu0 0.0
    %970 = vmatprep.subr.mxu0 0.0
    %971 = vmatpush1.xpose.msra.mxu0 0.0
    %972 = vmatprep.subr.mxu0 0.0
    %973 = vmatpush1.xpose.msra.mxu0 0.0
    %974 = vmatprep.subr.mxu0 0.0
    %975 = vmatpush1.xpose.msra.mxu0 0.0
    %976 = vmatprep.subr.mxu0 0.0
    %977 = vmatpush1.xpose.msra.mxu0 0.0
    %978 = vmatprep.subr.mxu0 0.0
    %979 = vmatpush1.xpose.msra.mxu0 0.0
    %980 = vmatprep.subr.mxu0 0.0
    %981 = vmatpush1.xpose.msra.mxu0 0.0
    %982 = vmatprep.subr.mxu0 0.0
    %983 = vmatpush1.xpose.msra.mxu0 0.0
    %984 = vmatprep.subr.mxu0 0.0
    %985 = vmatpush1.xpose.msra.mxu0 0.0
    %986 = vmatprep.subr.mxu0 0.0
    %987 = vmatpush1.xpose.msra.mxu0 0.0
    %988 = vmatprep.subr.mxu0 0.0
    %989 = vmatpush1.xpose.msra.mxu0 0.0
    %990 = vmatprep.subr.mxu0 0.0
    %991 = vmatpush1.xpose.msra.mxu0 0.0
    %992 = vmatprep.subr.mxu0 0.0
    %993 = vmatpush1.xpose.msra.mxu0 0.0
    %994 = vmatprep.subr.mxu0 0.0
    %995 = vmatpush1.xpose.msra.mxu0 0.0
    %996 = vmatprep.subr.mxu0 0.0
    %997 = vmatpush1.xpose.msra.mxu0 0.0
    %998 = vmatprep.subr.mxu0 0.0
    %999 = vmatpush1.xpose.msra.mxu0 0.0
    %1000 = vmatprep.subr.mxu0 0.0
    %1001 = vmatpush1.xpose.msra.mxu0 0.0
    %1002 = vmatprep.subr.mxu0 0.0
    %1003 = vmatpush1.xpose.msra.mxu0 0.0
    %1004 = vmatprep.subr.mxu0 0.0
    %1005 = vmatpush1.xpose.msra.mxu0 0.0
    %1006 = vmatprep.subr.mxu0 0.0
    %1007 = vmatpush1.xpose.msra.mxu0 0.0
    %1008 = vmatprep.subr.mxu0 0.0
    %1009 = vmatpush1.xpose.msra.mxu0 0.0
    %1010 = vmatprep.subr.mxu0 0.0
    %1011 = vmatpush1.xpose.msra.mxu0 0.0
    %1012 = vmatprep.subr.mxu0 0.0
    %1013 = vmatpush1.xpose.msra.mxu0 0.0
    %1014 = vmatprep.subr.mxu0 0.0
    %1015 = vmatpush1.xpose.msra.mxu0 0.0
    %1016 = vmatprep.subr.mxu0 0.0
    %1017 = vmatpush1.xpose.msra.mxu0 0.0
    %1018 = vmatprep.subr.mxu0 0.0
    %1019 = vmatpush1.xpose.msra.mxu0 0.0
    %1020 = vmatprep.subr.mxu0 0.0
    %1021 = vmatpush1.xpose.msra.mxu0 0.0
    %1022 = vmatprep.mubr.f32.mxu0 %v808
    %1023 = vmatmul.mubr.f32.gmra.mrb[0].mxu0 %v800
    %v1024 = vpop.f32.mrb[0].mxu0
    %v1025 = vadd.f32 %v955, %v1024
    %v1026 = vpop.f32.mrb[0].mxu0
    %1027 = vdwg.mxu0
    %1028 = vmatprep.subr.mxu0 %v81
    %1029 = vmatpush1.xpose.msra.mxu0 %v80
    %1030 = vmatprep.subr.mxu0 %v89
    %1031 = vmatpush1.xpose.msra.mxu0 %v88
    %1032 = vmatprep.subr.mxu0 %v97
    %1033 = vmatpush1.xpose.msra.mxu0 %v96
    %1034 = vmatprep.subr.mxu0 %v105
    %1035 = vmatpush1.xpose.msra.mxu0 %v104
    %1036 = vmatprep.subr.mxu0 0.0
    %1037 = vmatpush1.xpose.msra.mxu0 0.0
    %1038 = vmatprep.subr.mxu0 0.0
    %1039 = vmatpush1.xpose.msra.mxu0 0.0
    %1040 = vmatprep.subr.mxu0 0.0
    %1041 = vmatpush1.xpose.msra.mxu0 0.0
    %1042 = vmatprep.subr.mxu0 0.0
    %1043 = vmatpush1.xpose.msra.mxu0 0.0
    %1044 = vmatprep.subr.mxu0 0.0
    %1045 = vmatpush1.xpose.msra.mxu0 0.0
    %1046 = vmatprep.subr.mxu0 0.0
    %1047 = vmatpush1.xpose.msra.mxu0 0.0
    %1048 = vmatprep.subr.mxu0 0.0
    %1049 = vmatpush1.xpose.msra.mxu0 0.0
    %1050 = vmatprep.subr.mxu0 0.0
    %1051 = vmatpush1.xpose.msra.mxu0 0.0
    %1052 = vmatprep.subr.mxu0 0.0
    %1053 = vmatpush1.xpose.msra.mxu0 0.0
    %1054 = vmatprep.subr.mxu0 0.0
    %1055 = vmatpush1.xpose.msra.mxu0 0.0
    %1056 = vmatprep.subr.mxu0 0.0
    %1057 = vmatpush1.xpose.msra.mxu0 0.0
    %1058 = vmatprep.subr.mxu0 0.0
    %1059 = vmatpush1.xpose.msra.mxu0 0.0
    %1060 = vmatprep.subr.mxu0 0.0
    %1061 = vmatpush1.xpose.msra.mxu0 0.0
    %1062 = vmatprep.subr.mxu0 0.0
    %1063 = vmatpush1.xpose.msra.mxu0 0.0
    %1064 = vmatprep.subr.mxu0 0.0
    %1065 = vmatpush1.xpose.msra.mxu0 0.0
    %1066 = vmatprep.subr.mxu0 0.0
    %1067 = vmatpush1.xpose.msra.mxu0 0.0
    %1068 = vmatprep.subr.mxu0 0.0
    %1069 = vmatpush1.xpose.msra.mxu0 0.0
    %1070 = vmatprep.subr.mxu0 0.0
    %1071 = vmatpush1.xpose.msra.mxu0 0.0
    %1072 = vmatprep.subr.mxu0 0.0
    %1073 = vmatpush1.xpose.msra.mxu0 0.0
    %1074 = vmatprep.subr.mxu0 0.0
    %1075 = vmatpush1.xpose.msra.mxu0 0.0
    %1076 = vmatprep.subr.mxu0 0.0
    %1077 = vmatpush1.xpose.msra.mxu0 0.0
    %1078 = vmatprep.subr.mxu0 0.0
    %1079 = vmatpush1.xpose.msra.mxu0 0.0
    %1080 = vmatprep.subr.mxu0 0.0
    %1081 = vmatpush1.xpose.msra.mxu0 0.0
    %1082 = vmatprep.subr.mxu0 0.0
    %1083 = vmatpush1.xpose.msra.mxu0 0.0
    %1084 = vmatprep.subr.mxu0 0.0
    %1085 = vmatpush1.xpose.msra.mxu0 0.0
    %1086 = vmatprep.subr.mxu0 0.0
    %1087 = vmatpush1.xpose.msra.mxu0 0.0
    %1088 = vmatprep.subr.mxu0 0.0
    %1089 = vmatpush1.xpose.msra.mxu0 0.0
    %1090 = vmatprep.subr.mxu0 0.0
    %1091 = vmatpush1.xpose.msra.mxu0 0.0
    %1092 = vmatprep.mubr.f32.mxu0 %v809
    %1093 = vmatmul.mubr.f32.gmra.mrb[0].mxu0 %v807
    %v1094 = vpop.f32.mrb[0].mxu0
    %v1095 = vadd.f32 %v1025, %v1094
    %v1096 = vpop.f32.mrb[0].mxu0
    %1097 = vdwg.mxu0
    %v1098 = vmul.f32 %v1095, 2.0
    %v1099 = vmin.f32 %v1095, %v1098
    %1100 = vst.msk [vmem:[#allocation13] sm:$0x3] %vm441, %v1099
    // Predicated region
    $region38: #{tpu_custom_call.1} parent=1 // pred_check
      _
    $region39: #{tpu_custom_call.1} parent=1 // pred_check_branch
      %1102 = sbr.rel (0) target = $region41
    $region40: #{tpu_custom_call.1} parent=1 // pred_region
      %s1104 = ssub.s32 32, 32
      %1105 = vsyncadd [#allocation4], %s1104
      %s1107 = sshll.u32 [#allocation10], 4
      %s1108 = int_to_ptr.vmem [resolvable:$true] %s1107
      %1110 = dma.vmem_to_hbm [thread:$0]  %s1108, 32, %s5, [#allocation4]
    $region41: #{tpu_custom_call.1} parent=1 // pred_fallthru
      _
    // Predicated region
    $region42: #{tpu_custom_call.1} parent=1 // pred_check
      _
    $region43: #{tpu_custom_call.1} parent=1 // pred_check_branch
      %1112 = sbr.rel (0) target = $region45
    $region44: #{tpu_custom_call.1} parent=1 // pred_region
      %s1114 = ssub.s32 32, 32
      %1115 = vsyncadd [#allocation12], %s1114
      %s1117 = sshll.u32 [#allocation11], 4
      %s1118 = int_to_ptr.vmem [resolvable:$true] %s1117
      %1120 = dma.vmem_to_hbm [thread:$0]  %s1118, 32, %s6, [#allocation12]
    $region45: #{tpu_custom_call.1} parent=1 // pred_fallthru
      _
    // Predicated region
    $region46: #{tpu_custom_call.1} parent=1 // pred_check
      _
    $region47: #{tpu_custom_call.1} parent=1 // pred_check_branch
      %1122 = sbr.rel (0) target = $region49
    $region48: #{tpu_custom_call.1} parent=1 // pred_region
      %s1124 = ssub.s32 32, 32
      %1125 = vsyncadd [#allocation12], %s1124
      %s1127 = sshll.u32 [#allocation13], 4
      %s1128 = int_to_ptr.vmem [resolvable:$true] %s1127
      %1130 = dma.vmem_to_hbm [thread:$0]  %s1128, 32, %s7, [#allocation12]
    $region49: #{tpu_custom_call.1} parent=1 // pred_fallthru
      _
    // Predicated region
    $region50: #{tpu_custom_call.1} parent=1 // pred_check
      _
    $region51: #{tpu_custom_call.1} parent=1 // pred_check_branch
      %1132 = sbr.rel (0) target = $region53
    $region52: #{tpu_custom_call.1} parent=1 // pred_region
      %1133 = dma.done [#allocation4], 32
    $region53: #{tpu_custom_call.1} parent=1 // pred_fallthru
      _
    // Predicated region
    $region54: #{tpu_custom_call.1} parent=1 // pred_check
      _
    $region55: #{tpu_custom_call.1} parent=1 // pred_check_branch
      %1135 = sbr.rel (0) target = $region57
    $region56: #{tpu_custom_call.1} parent=1 // pred_region
      %1136 = dma.done [#allocation12], 32
    $region57: #{tpu_custom_call.1} parent=1 // pred_fallthru
      _
    // Predicated region
    $region58: #{tpu_custom_call.1} parent=1 // pred_check
      _
    $region59: #{tpu_custom_call.1} parent=1 // pred_check_branch
      %1138 = sbr.rel (0) target = $region61
    $region60: #{tpu_custom_call.1} parent=1 // pred_region
      %1139 = dma.done [#allocation12], 32
    $region61: #{tpu_custom_call.1} parent=1 // pred_fallthru
      _
    %1140 = vsyncpa [#allocation3], 1
    %1141 = vsyncpa [#allocation6], 1
    %1142 = vsyncpa [#allocation9], 1
    %1143 = vsyncpa [#allocation4], 1
    %1144 = vsyncpa [#allocation12], 1

</llo_original>
